<compile_context>
chip_gen: v7x
topology: tpu7x:2x2x1
jax: 0.10.0
libtpu: 0.0.40
codegen_flags: <defaults>
</compile_context>

<pallas_src>
import jax
import jax.numpy as jnp
from jax.experimental import pallas as pl
from jax.experimental.pallas import tpu as pltpu

A_AB = -1.72879524581
A_L = -1.68976005407
B_AB = 1.71528903296
B_L = 1.68976005407

STEEPNESS = 4.0

# Per-branch affine constants: y = scale * x + offset  where
#   y = (B - A) * (x + 1) / 2 + A  ==  ((B - A)/2) * x + ((B - A)/2 + A)
SCALE_L = (B_L - A_L) / 2.0
OFF_L = (B_L - A_L) / 2.0 + A_L
SCALE_AB = (B_AB - A_AB) / 2.0
OFF_AB = (B_AB - A_AB) / 2.0 + A_AB

# ~2 MiB blocks: at/above the measured HBM-roofline knee (~1-2 MiB tiles), and
# with input + output double-buffered (~4x block bytes resident) comfortably
# inside v5e's 16 MiB scoped-VMEM default and v7x's 64 MiB physical VMEM.
_TARGET_BLOCK_BYTES = 2 * 1024 * 1024

# Cap rows per block so the lane-padded (r_tile, 1) scale/offset VMEM buffers
# (r_tile * 128 * 4 B each, double-buffered) stay small.
_MAX_ROW_TILE = 1024


def _round_up(x: int, m: int) -> int:
    return -(-x // m) * m


def _cdiv(a: int, b: int) -> int:
    return -(-a // b)


def _tanh_correction_kernel(x_ref, scale_ref, off_ref, o_ref):
    # x_ref / o_ref: (r_tile, l_tile) VMEM tiles of the flattened (N*C, H*W) view.
    # scale_ref / off_ref: (r_tile, 1) f32 per-row affine constants (gate folded).
    x = x_ref[...].astype(jnp.float32)
    o_ref[...] = (x * scale_ref[...] + off_ref[...]).astype(o_ref.dtype)


def _choose_tiles(nc: int, hw: int, itemsize: int):
    """Pick (row_tile, lane_tile) for the (nc, hw) flattened view."""
    sublane = max(8, 32 // itemsize)  # 8 for f32, 16 for bf16, 32 for int8/fp8
    lane = 128
    target = _TARGET_BLOCK_BYTES

    # ---- rows per block ----
    if nc <= sublane:
        r_tile = nc  # full extent along the row dim: always a legal block dim
    else:
        row_bytes = max(1, hw * itemsize)
        rows = max(sublane, (target // row_bytes) // sublane * sublane)
        r_tile = min(rows, (nc // sublane) * sublane, _MAX_ROW_TILE)
    n_row_blocks = _cdiv(nc, r_tile)

    # ---- minimum total grid steps ----
    # >= 4 steps keeps the Pallas pipeline double-buffered and gives v7x's two
    # TensorCores something to shard; skip forcing splits on tiny arrays.
    total_bytes = nc * hw * itemsize
    if total_bytes >= 4 * target:
        min_total = 4
    elif total_bytes >= target:
        min_total = 2
    else:
        min_total = 1
    min_lane_blocks = _cdiv(min_total, n_row_blocks)

    # ---- lanes per block ----
    if hw <= lane:
        l_tile = hw  # full extent
    else:
        # Budget is per *block*, so divide by the row tile (review fix).
        budget_lanes = max(lane, (target // (r_tile * itemsize)) // lane * lane)
        n_lane_blocks = max(_cdiv(hw, budget_lanes), min_lane_blocks)
        # Prefer an even total block count so v7x can shard evenly across TCs.
        if min_total >= 2 and (n_row_blocks * n_lane_blocks) % 2 == 1:
            n_lane_blocks += 1
        # Multiple of 128; ragged trailing block is masked by Pallas, so this
        # is legal even when hw is not a multiple of 128.
        l_tile = _round_up(_cdiv(hw, n_lane_blocks), lane)
        if l_tile >= hw:
            l_tile = hw

    return r_tile, l_tile


def tanh_correction(x: jax.Array, lumi_offset: jax.Array) -> jax.Array:
    """x: (N, C, H, W); lumi_offset: (1,) float32 parameter."""
    n, c, h, w = x.shape
    nc, hw = n * c, h * w

    # Free layout plumbing: contiguous reshape to a lane-dense 2D view.
    x2 = x.reshape(nc, hw)

    # steep_sig(lumi_offset) = 1 / (1 + exp(-steepness * lumi_offset))
    gate = 1.0 / (1.0 + jnp.exp(-jnp.float32(STEEPNESS) * lumi_offset[0]))

    # Tiny per-row f32 constants table: channel 0 of each image gets the L
    # branch with the sigmoid gate folded in; other channels get the AB branch.
    # Kept in f32 so the in-kernel FMA matches the f32 PyTorch reference even
    # for bf16 activations.
    ch = jnp.arange(nc, dtype=jnp.int32) % c
    is_l = ch == 0
    scale = jnp.where(is_l, jnp.float32(SCALE_L) * gate, jnp.float32(SCALE_AB))
    offset = jnp.where(is_l, jnp.float32(OFF_L) * gate, jnp.float32(OFF_AB))
    scale = scale.astype(jnp.float32).reshape(nc, 1)
    offset = offset.astype(jnp.float32).reshape(nc, 1)

    itemsize = jnp.dtype(x.dtype).itemsize
    r_tile, l_tile = _choose_tiles(nc, hw, itemsize)
    grid = (pl.cdiv(nc, r_tile), pl.cdiv(hw, l_tile))

    # Explicit VMEM budget from the chosen tiles: in + out double-buffered
    # (~4x block bytes) + lane-padded scale/offset buffers + slack. Decouples
    # the tile picker from per-generation scoped defaults (16 MiB v5e,
    # 32 MiB v6e/v7x).
    block_bytes = r_tile * l_tile * itemsize
    const_bytes = 2 * 2 * _round_up(r_tile, 8) * 128 * 4
    vmem_limit = 4 * block_bytes + const_bytes + (2 << 20)
    vmem_limit = int(min(max(vmem_limit, 8 << 20), 32 << 20))

    out2 = pl.pallas_call(
        _tanh_correction_kernel,
        out_shape=jax.ShapeDtypeStruct((nc, hw), x.dtype),
        grid=grid,
        in_specs=[
            pl.BlockSpec((r_tile, l_tile), lambda i, j: (i, j)),
            pl.BlockSpec((r_tile, 1), lambda i, j: (i, 0)),
            pl.BlockSpec((r_tile, 1), lambda i, j: (i, 0)),
        ],
        out_specs=pl.BlockSpec((r_tile, l_tile), lambda i, j: (i, j)),
        compiler_params=pltpu.CompilerParams(
            dimension_semantics=("parallel", "parallel"),
            vmem_limit_bytes=vmem_limit,
        ),
    )(x2, scale, offset)

    return out2.reshape(n, c, h, w)


def tanh_correction_ref(x: jax.Array, lumi_offset: jax.Array) -> jax.Array:
    """Pure-JAX reference (mirrors the PyTorch forward)."""
    x_l = x[:, 0:1, :, :]
    x_ab = x[:, 1:, :, :]
    x_l = (B_L - A_L) * (x_l + 1.0) / 2.0 + A_L
    x_ab = (B_AB - A_AB) * (x_ab + 1.0) / 2.0 + A_AB
    sig = 1.0 / (1.0 + jnp.exp(-STEEPNESS * lumi_offset))
    return jnp.concatenate([x_l * sig, x_ab], axis=1)


if __name__ == "__main__":
    key = jax.random.PRNGKey(0)
    N, C, H, W = 2, 4, 16, 16  # small NCHW example
    x = jax.random.uniform(
        key, (N, C, H, W), dtype=jnp.float32, minval=-1.0, maxval=1.0
    )

    # Deterministic parameter init, matching torch.nn.Parameter(torch.tensor([1.0]))
    lumi_offset = jnp.array([1.0], dtype=jnp.float32)

    out = tanh_correction(x, lumi_offset)
    out = jax.block_until_ready(out)

    ref = tanh_correction_ref(x, lumi_offset)
    assert out.shape == (N, C, H, W)
    assert jnp.allclose(out, ref, atol=1e-5, rtol=1e-5)

    # Also exercise a larger, odd-sized image to cover the lane-tiled path
    # (ragged trailing lane block, multi-step grid).
    N2, C2, H2, W2 = 1, 3, 250, 300
    x2 = jax.random.uniform(
        jax.random.PRNGKey(1), (N2, C2, H2, W2), dtype=jnp.float32,
        minval=-1.0, maxval=1.0,
    )
    out2 = jax.block_until_ready(tanh_correction(x2, lumi_offset))
    ref2 = tanh_correction_ref(x2, lumi_offset)
    assert jnp.allclose(out2, ref2, atol=1e-5, rtol=1e-5)

    print("KERNEL_OK")
</pallas_src>

<mosaic_0001>
module attributes {stable_mosaic.version = 11 : i64} {
  func.func @_tanh_correction_kernel(%arg0: i32, %arg1: i32, %arg2: memref<8x256xf32, #tpu.memory_space<vmem>>, %arg3: memref<8x1xf32, #tpu.memory_space<vmem>>, %arg4: memref<8x1xf32, #tpu.memory_space<vmem>>, %arg5: memref<8x256xf32, #tpu.memory_space<vmem>>) attributes {dimension_semantics = [#tpu.dimension_semantics<parallel>, #tpu.dimension_semantics<parallel>], iteration_bounds = array<i64: 1, 1>, scalar_prefetch = 0 : i64, scratch_operands = 0 : i64, tpu.core_type = #tpu.core_type<tc>, window_params = [{transform_indices = @transform_0, window_bounds = array<i64: 8, 256>}, {transform_indices = @transform_1, window_bounds = array<i64: 8, 1>}, {transform_indices = @transform_2, window_bounds = array<i64: 8, 1>}, {transform_indices = @transform_3, window_bounds = array<i64: 8, 256>}]} {
    %c0 = arith.constant 0 : index
    %c0_0 = arith.constant 0 : index
    %0 = vector.load %arg2[%c0, %c0_0] : memref<8x256xf32, #tpu.memory_space<vmem>>, vector<8x256xf32>
    %c0_1 = arith.constant 0 : index
    %c0_2 = arith.constant 0 : index
    %1 = vector.load %arg3[%c0_1, %c0_2] : memref<8x1xf32, #tpu.memory_space<vmem>>, vector<8x1xf32>
    %2 = vector.broadcast %1 : vector<8x1xf32> to vector<8x256xf32>
    %3 = arith.mulf %0, %2 : vector<8x256xf32>
    %c0_3 = arith.constant 0 : index
    %c0_4 = arith.constant 0 : index
    %4 = vector.load %arg4[%c0_3, %c0_4] : memref<8x1xf32, #tpu.memory_space<vmem>>, vector<8x1xf32>
    %5 = vector.broadcast %4 : vector<8x1xf32> to vector<8x256xf32>
    %6 = arith.addf %3, %5 : vector<8x256xf32>
    %c0_5 = arith.constant 0 : index
    %c0_6 = arith.constant 0 : index
    %7 = vector.load %arg5[%c0_5, %c0_6] : memref<8x256xf32, #tpu.memory_space<vmem>>, vector<8x256xf32>
    tpu.vector_store %arg5[%c0_5, %c0_6], %6 {strides = array<i32>} : memref<8x256xf32, #tpu.memory_space<vmem>>, vector<8x256xf32>,
    return
  }
  func.func @transform_0(%arg0: i32, %arg1: i32) -> (i32, i32) {
    %c0_i32 = arith.constant 0 : i32
    return %arg0, %arg1 : i32, i32
  }
  func.func @transform_1(%arg0: i32, %arg1: i32) -> (i32, i32) {
    %c0_i32 = arith.constant 0 : i32
    %c0_i32_0 = arith.constant 0 : i32
    return %arg0, %c0_i32 : i32, i32
  }
  func.func @transform_2(%arg0: i32, %arg1: i32) -> (i32, i32) {
    %c0_i32 = arith.constant 0 : i32
    %c0_i32_0 = arith.constant 0 : i32
    return %arg0, %c0_i32 : i32, i32
  }
  func.func @transform_3(%arg0: i32, %arg1: i32) -> (i32, i32) {
    %c0_i32 = arith.constant 0 : i32
    return %arg0, %arg1 : i32, i32
  }
}

</mosaic_0001>

<llo_original>
// kernel: tpu_custom_call.1
$region0: #{tpu_custom_call.1}
  #allocation0 [shape = 'u32[]', space=smem, size = 0x4, offset = 0x4, fixed_abs, tag = 'smem constant byte address 0x4 - core index']
  #allocation1 [shape = 'u32[144,128]{1,0:T(1,128)}', space=vmem, size = 0x12000, scoped, tag = 'internal scratch']
  %s0 = inlined_call_operand.vmem [shape: f32[8,256], index: 0, kind: input, shape index: {}]
  %s1 = inlined_call_operand.vmem [shape: f32[8,1], index: 1, kind: input, shape index: {}]
  %s2 = inlined_call_operand.vmem [shape: f32[8,1], index: 2, kind: input, shape index: {}]
  %s3 = inlined_call_operand.hbm [shape: f32[8,256], index: 3, kind: output, shape index: {}]
  %s4 = sld [smem:[#allocation0]]
  $region22: #{tpu_custom_call.1} parent=0
    _
  %s6 = ssub.s32 1, %s4
  %s7 = scalar_select 0, %s6, %s4
  $region1: #{tpu_custom_call.1} parent=0
    #allocation2 [shape = 'u8[8192]{0}', space=vmem, size = 0x2000, scoped, tag = 'output window, operand 0, single buffered']
    #allocation3 [shape = 's32[1]{0}', space=sflag, size = 0x4, scoped, tag = 'scoped memory for tpu_custom_call.1']
    %8 = vsyncpa [#allocation3], 0
    // Predicated region
    $region2: #{tpu_custom_call.1} parent=1 // pred_check
      _
    $region3: #{tpu_custom_call.1} parent=1 // pred_check_branch
      %10 = sbr.rel (0) target = $region5
    $region4: #{tpu_custom_call.1} parent=1 // pred_region
      _
    $region5: #{tpu_custom_call.1} parent=1 // pred_fallthru
      _
    // Predicated region
    $region6: #{tpu_custom_call.1} parent=1 // pred_check
      _
    $region7: #{tpu_custom_call.1} parent=1 // pred_check_branch
      %12 = sbr.rel (0) target = $region9
    $region8: #{tpu_custom_call.1} parent=1 // pred_region
      _
    $region9: #{tpu_custom_call.1} parent=1 // pred_fallthru
      _
    // Predicated region
    $region10: #{tpu_custom_call.1} parent=1 // pred_check
      _
    $region11: #{tpu_custom_call.1} parent=1 // pred_check_branch
      %14 = sbr.rel (0) target = $region13
    $region12: #{tpu_custom_call.1} parent=1 // pred_region
      _
    $region13: #{tpu_custom_call.1} parent=1 // pred_fallthru
      _
    %v15 = vld [vmem:[%s0] sm:$0xff]
    %v16 = vld [vmem:[%s0 + $0x8] sm:$0xff]
    %v17 = vld [vmem:[%s1] sm:$0xff]
    %19 = vset.pattern.permute.xlu0 0
    %20 = vperm.xlu0 %19, %v17
    %v21 = vpop.permute.xlu0 %20
    %v23 = vmul.f32 %v15, %v21
    %v24 = vmul.f32 %v16, %v21
    %v25 = vld [vmem:[%s2] sm:$0xff]
    %27 = vset.pattern.permute.xlu0 0
    %28 = vperm.xlu0 %27, %v25
    %v29 = vpop.permute.xlu0 %28
    %v31 = vadd.f32 %v23, %v29
    %v32 = vadd.f32 %v24, %v29
    %33 = vst [vmem:[#allocation2] sm:$0xff] %v31
    %34 = vst [vmem:[#allocation2 + $0x8] sm:$0xff] %v32
    // Predicated region
    $region14: #{tpu_custom_call.1} parent=1 // pred_check
      _
    $region15: #{tpu_custom_call.1} parent=1 // pred_check_branch
      %36 = sbr.rel (0) target = $region17
    $region16: #{tpu_custom_call.1} parent=1 // pred_region
      %s38 = ssub.s32 256, 256
      %39 = vsyncadd [#allocation3], %s38
      %s41 = sshll.u32 [#allocation2], 4
      %s42 = int_to_ptr.vmem [resolvable:$true] %s41
      %44 = dma.vmem_to_hbm [thread:$0]  %s42, 256, %s3, [#allocation3]
    $region17: #{tpu_custom_call.1} parent=1 // pred_fallthru
      _
    // Predicated region
    $region18: #{tpu_custom_call.1} parent=1 // pred_check
      _
    $region19: #{tpu_custom_call.1} parent=1 // pred_check_branch
      %46 = sbr.rel (0) target = $region21
    $region20: #{tpu_custom_call.1} parent=1 // pred_region
      %47 = dma.done [#allocation3], 256
    $region21: #{tpu_custom_call.1} parent=1 // pred_fallthru
      _
    %48 = vsyncpa [#allocation3], 1

</llo_original>
